<compile_context>
chip_gen: v5e
topology: v5e:2x2
jax: 0.10.0
libtpu: 0.0.40
codegen_flags: <defaults>
</compile_context>

<pallas_src>
import jax
import jax.numpy as jnp
from jax.experimental import pallas as pl
from jax.experimental.pallas import tpu as pltpu


def _value_nn_kernel(xT_ref, w1_ref, w2_ref, w3_ref, bias_ref, oT_ref):
    """One batch tile (feature-major): oT = W3 @ relu(W2 @ relu(W1 @ xT + b1) + b2) + b3."""
    hidden = w1_ref.shape[0]
    out_size = w3_ref.shape[0]

    bias = bias_ref[...]                         # (pad, 3) f32, tiny
    b1 = bias[:hidden, 0:1]                      # (hidden, 1) -> broadcast over lanes
    b2 = bias[:hidden, 1:2]
    b3 = bias[:out_size, 2:3]

    # In-kernel cast (bf16 bandwidth knob); no extra HBM pass over x in the wrapper.
    x = xT_ref[...].astype(w1_ref.dtype)         # (in_size, TB), batch on lanes

    h1 = jnp.dot(w1_ref[...], x, preferred_element_type=jnp.float32)       # (hidden, TB)
    h1 = jnp.maximum(h1 + b1, 0.0)               # f32 epilogue on VPU (v5e-safe)
    h2 = jnp.dot(w2_ref[...], h1.astype(w2_ref.dtype),
                 preferred_element_type=jnp.float32)                       # (hidden, TB)
    h2 = jnp.maximum(h2 + b2, 0.0)
    out = jnp.dot(w3_ref[...], h2.astype(w3_ref.dtype),
                  preferred_element_type=jnp.float32)                      # (out, TB)
    oT_ref[...] = (out + b3).astype(oT_ref.dtype)


def _pick_batch_tile(B, batch_tile):
    """Lane-axis tile: multiple of 128 (or the full B), >=2 grid steps when possible
    so v7x's two TensorCores both get work under dimension_semantics=('parallel',)."""
    if B <= 256:
        return B                                  # single full-extent block
    target = min(batch_tile, ((pl.cdiv(B, 2) + 127) // 128) * 128)
    return max(128, (target // 128) * 128)


def prepare_params(w1, b1, w2, b2, w3, b3, *, matmul_dtype=jnp.float32):
    """Pack parameters ONCE (not per forward). Weights in PyTorch nn.Linear layout
    (out_features, in_features); biases (out_features,).  bf16 matmul_dtype only
    pays off as a bandwidth knob when activations are bf16 upstream too."""
    hidden = w1.shape[0]
    out_size = w3.shape[0]
    pad = max(hidden, out_size)
    bias_pack = jnp.zeros((pad, 3), jnp.float32)          # one tiny DMA stream
    bias_pack = bias_pack.at[:hidden, 0].set(b1.reshape(-1))
    bias_pack = bias_pack.at[:hidden, 1].set(b2.reshape(-1))
    bias_pack = bias_pack.at[:out_size, 2].set(b3.reshape(-1))
    cast = lambda w: w.astype(matmul_dtype)
    return cast(w1), cast(w2), cast(w3), bias_pack


def value_nn_forward_t(xT, params, *, batch_tile=2048):
    """Feature-major forward.  xT: (input_size, B) f32; params from prepare_params.
    Returns (output_size, B) f32 — lane-dense loads, intermediates, and stores."""
    w1, w2, w3, bias_pack = params
    in_size, B = xT.shape
    hidden = w1.shape[0]
    out_size = w3.shape[0]

    tb = _pick_batch_tile(B, batch_tile)
    grid = (pl.cdiv(B, tb),)

    full = lambda a: pl.BlockSpec(a.shape, lambda i: (0,) * a.ndim)

    flops = 2 * B * (in_size * hidden + hidden * hidden + hidden * out_size)
    bytes_accessed = (xT.size * xT.dtype.itemsize
                      + sum(w.size * w.dtype.itemsize for w in (w1, w2, w3))
                      + bias_pack.size * 4
                      + B * out_size * 4)

    return pl.pallas_call(
        _value_nn_kernel,
        out_shape=jax.ShapeDtypeStruct((out_size, B), jnp.float32),
        grid=grid,
        in_specs=[
            pl.BlockSpec((in_size, tb), lambda i: (0, i)),   # x streamed over batch lanes
            full(w1), full(w2), full(w3), full(bias_pack),   # VMEM-resident params
        ],
        out_specs=pl.BlockSpec((out_size, tb), lambda i: (0, i)),
        compiler_params=pltpu.CompilerParams(
            dimension_semantics=("parallel",)),               # v7x: 2 TCs split the grid
        cost_estimate=pl.CostEstimate(flops=flops, transcendentals=0,
                                      bytes_accessed=bytes_accessed),
    )(xT, w1, w2, w3, bias_pack)


def value_nn_forward(x, params, *, batch_tile=2048):
    """PyTorch-layout convenience wrapper: x (B, input_size) -> (B, output_size).
    The kernel computes feature-major; the tiny (out, B) result is transposed back
    in XLA (far cheaper than lane-sparse masked stores inside the kernel)."""
    # TODO(synk): have producers/consumers adopt the (features, B) layout end-to-end
    # so the input/output transposes disappear entirely.
    outT = value_nn_forward_t(x.T, params, batch_tile=batch_tile)
    return outT.T


def init_params(key, input_size, hidden_size, output_size):
    """Deterministic init mimicking nn.Linear's U(-1/sqrt(fan_in), 1/sqrt(fan_in)).
    Weights stored in PyTorch layout (out_features, in_features)."""
    ks = jax.random.split(key, 6)

    def linear(kw, kb, fan_in, fan_out):
        bound = 1.0 / jnp.sqrt(fan_in)
        w = jax.random.uniform(kw, (fan_out, fan_in), jnp.float32, -bound, bound)
        b = jax.random.uniform(kb, (fan_out,), jnp.float32, -bound, bound)
        return w, b

    w1, b1 = linear(ks[0], ks[1], input_size, hidden_size)
    w2, b2 = linear(ks[2], ks[3], hidden_size, hidden_size)
    w3, b3 = linear(ks[4], ks[5], hidden_size, output_size)
    return w1, b1, w2, b2, w3, b3


if __name__ == "__main__":
    input_size, hidden_size, output_size = 16, 32, 4

    key = jax.random.PRNGKey(0)
    kp, kx1, kx2, kx3 = jax.random.split(key, 4)

    w1, b1, w2, b2, w3, b3 = init_params(kp, input_size, hidden_size, output_size)
    params_f32 = prepare_params(w1, b1, w2, b2, w3, b3)
    params_bf16 = prepare_params(w1, b1, w2, b2, w3, b3, matmul_dtype=jnp.bfloat16)

    def ref_fwd(xv):  # PyTorch semantics: x @ W.T + b
        h = jnp.maximum(xv @ w1.T + b1, 0.0)
        h = jnp.maximum(h @ w2.T + b2, 0.0)
        return h @ w3.T + b3

    # 1) Exact-f32 path, small batch (single full-extent block), PyTorch-layout API.
    x_small = jax.random.normal(kx1, (8, input_size), dtype=jnp.float32)
    out = jax.block_until_ready(value_nn_forward(x_small, params_f32))
    assert out.shape == (8, output_size)
    assert jnp.allclose(out, ref_fwd(x_small), atol=1e-5, rtol=1e-5)

    # 2) bf16 bandwidth knob (f32 accumulation, in-kernel x cast).
    out_bf16 = jax.block_until_ready(value_nn_forward(x_small, params_bf16))
    assert jnp.allclose(out_bf16, ref_fwd(x_small), atol=5e-2, rtol=5e-2)

    # 3) Larger batch, native feature-major in/out, 2 "parallel" grid steps (v7x).
    x_big = jax.random.normal(kx2, (1024, input_size), dtype=jnp.float32)
    outT = jax.block_until_ready(value_nn_forward_t(x_big.T, params_f32))
    assert outT.shape == (output_size, 1024)
    assert jnp.allclose(outT.T, ref_fwd(x_big), atol=1e-4, rtol=1e-4)

    # 4) Batch not a multiple of the tile -> partial last block, masked writeback.
    x_odd = jax.random.normal(kx3, (700, input_size), dtype=jnp.float32)
    out_odd = jax.block_until_ready(value_nn_forward(x_odd, params_f32))
    assert out_odd.shape == (700, output_size)
    assert jnp.allclose(out_odd, ref_fwd(x_odd), atol=1e-4, rtol=1e-4)

    print("KERNEL_OK")
</pallas_src>

<mosaic_0001>
module attributes {stable_mosaic.version = 11 : i64} {
  func.func @_value_nn_kernel(%arg0: i32, %arg1: memref<16x8xf32, #tpu.memory_space<vmem>>, %arg2: memref<32x16xf32, #tpu.memory_space<vmem>>, %arg3: memref<32x32xf32, #tpu.memory_space<vmem>>, %arg4: memref<4x32xf32, #tpu.memory_space<vmem>>, %arg5: memref<32x3xf32, #tpu.memory_space<vmem>>, %arg6: memref<4x8xf32, #tpu.memory_space<vmem>>) attributes {dimension_semantics = [#tpu.dimension_semantics<parallel>], iteration_bounds = array<i64: 1>, scalar_prefetch = 0 : i64, scratch_operands = 0 : i64, tpu.core_type = #tpu.core_type<tc>, window_params = [{transform_indices = @transform_0, window_bounds = array<i64: 16, 8>}, {pipeline_mode = #tpu.pipeline_mode<synchronous>, transform_indices = @transform_1, window_bounds = array<i64: 32, 16>}, {pipeline_mode = #tpu.pipeline_mode<synchronous>, transform_indices = @transform_2, window_bounds = array<i64: 32, 32>}, {pipeline_mode = #tpu.pipeline_mode<synchronous>, transform_indices = @transform_3, window_bounds = array<i64: 4, 32>}, {pipeline_mode = #tpu.pipeline_mode<synchronous>, transform_indices = @transform_4, window_bounds = array<i64: 32, 3>}, {transform_indices = @transform_5, window_bounds = array<i64: 4, 8>}]} {
    %c0 = arith.constant 0 : index
    %c0_0 = arith.constant 0 : index
    %0 = vector.load %arg5[%c0, %c0_0] : memref<32x3xf32, #tpu.memory_space<vmem>>, vector<32x3xf32>
    %1 = vector.extract_strided_slice %0 {offsets = [0, 0], sizes = [32, 1], strides = [1, 1]} : vector<32x3xf32> to vector<32x1xf32>
    %2 = vector.extract_strided_slice %0 {offsets = [0, 1], sizes = [32, 1], strides = [1, 1]} : vector<32x3xf32> to vector<32x1xf32>
    %3 = vector.extract_strided_slice %0 {offsets = [0, 2], sizes = [4, 1], strides = [1, 1]} : vector<32x3xf32> to vector<4x1xf32>
    %c0_1 = arith.constant 0 : index
    %c0_2 = arith.constant 0 : index
    %4 = vector.load %arg1[%c0_1, %c0_2] : memref<16x8xf32, #tpu.memory_space<vmem>>, vector<16x8xf32>
    %c0_3 = arith.constant 0 : index
    %c0_4 = arith.constant 0 : index
    %5 = vector.load %arg2[%c0_3, %c0_4] : memref<32x16xf32, #tpu.memory_space<vmem>>, vector<32x16xf32>
    %cst = arith.constant dense<0.000000e+00> : vector<32x8xf32>
    %6 = tpu.matmul %5, %4, %cst {dimension_numbers = #tpu.dot_dimension_numbers<[1], [0], [0], [1], [0, 0, 1, 1], [], []>} : vector<32x16xf32>, vector<16x8xf32>, vector<32x8xf32> -> vector<32x8xf32>
    %7 = vector.broadcast %1 : vector<32x1xf32> to vector<32x8xf32>
    %8 = arith.addf %6, %7 : vector<32x8xf32>
    %cst_5 = arith.constant 0.000000e+00 : f32
    %9 = vector.broadcast %cst_5 : f32 to vector<32x8xf32>
    %10 = arith.maximumf %8, %9 : vector<32x8xf32>
    %c0_6 = arith.constant 0 : index
    %c0_7 = arith.constant 0 : index
    %11 = vector.load %arg3[%c0_6, %c0_7] : memref<32x32xf32, #tpu.memory_space<vmem>>, vector<32x32xf32>
    %cst_8 = arith.constant dense<0.000000e+00> : vector<32x8xf32>
    %12 = tpu.matmul %11, %10, %cst_8 {dimension_numbers = #tpu.dot_dimension_numbers<[1], [0], [0], [1], [0, 0, 1, 1], [], []>} : vector<32x32xf32>, vector<32x8xf32>, vector<32x8xf32> -> vector<32x8xf32>
    %13 = vector.broadcast %2 : vector<32x1xf32> to vector<32x8xf32>
    %14 = arith.addf %12, %13 : vector<32x8xf32>
    %cst_9 = arith.constant 0.000000e+00 : f32
    %15 = vector.broadcast %cst_9 : f32 to vector<32x8xf32>
    %16 = arith.maximumf %14, %15 : vector<32x8xf32>
    %c0_10 = arith.constant 0 : index
    %c0_11 = arith.constant 0 : index
    %17 = vector.load %arg4[%c0_10, %c0_11] : memref<4x32xf32, #tpu.memory_space<vmem>>, vector<4x32xf32>
    %cst_12 = arith.constant dense<0.000000e+00> : vector<4x8xf32>
    %18 = tpu.matmul %17, %16, %cst_12 {dimension_numbers = #tpu.dot_dimension_numbers<[1], [0], [0], [1], [0, 0, 1, 1], [], []>} : vector<4x32xf32>, vector<32x8xf32>, vector<4x8xf32> -> vector<4x8xf32>
    %19 = vector.broadcast %3 : vector<4x1xf32> to vector<4x8xf32>
    %20 = arith.addf %18, %19 : vector<4x8xf32>
    %c0_13 = arith.constant 0 : index
    %c0_14 = arith.constant 0 : index
    %21 = vector.load %arg6[%c0_13, %c0_14] : memref<4x8xf32, #tpu.memory_space<vmem>>, vector<4x8xf32>
    tpu.vector_store %arg6[%c0_13, %c0_14], %20 {strides = array<i32>} : memref<4x8xf32, #tpu.memory_space<vmem>>, vector<4x8xf32>,
    return
  }
  func.func @transform_0(%arg0: i32) -> (i32, i32) {
    %c0_i32 = arith.constant 0 : i32
    %c0_i32_0 = arith.constant 0 : i32
    return %c0_i32, %arg0 : i32, i32
  }
  func.func @transform_1(%arg0: i32) -> (i32, i32) {
    %c0_i32 = arith.constant 0 : i32
    %c0_i32_0 = arith.constant 0 : i32
    %c0_i32_1 = arith.constant 0 : i32
    return %c0_i32, %c0_i32_0 : i32, i32
  }
  func.func @transform_2(%arg0: i32) -> (i32, i32) {
    %c0_i32 = arith.constant 0 : i32
    %c0_i32_0 = arith.constant 0 : i32
    %c0_i32_1 = arith.constant 0 : i32
    return %c0_i32, %c0_i32_0 : i32, i32
  }
  func.func @transform_3(%arg0: i32) -> (i32, i32) {
    %c0_i32 = arith.constant 0 : i32
    %c0_i32_0 = arith.constant 0 : i32
    %c0_i32_1 = arith.constant 0 : i32
    return %c0_i32, %c0_i32_0 : i32, i32
  }
  func.func @transform_4(%arg0: i32) -> (i32, i32) {
    %c0_i32 = arith.constant 0 : i32
    %c0_i32_0 = arith.constant 0 : i32
    %c0_i32_1 = arith.constant 0 : i32
    return %c0_i32, %c0_i32_0 : i32, i32
  }
  func.func @transform_5(%arg0: i32) -> (i32, i32) {
    %c0_i32 = arith.constant 0 : i32
    %c0_i32_0 = arith.constant 0 : i32
    return %c0_i32, %arg0 : i32, i32
  }
}

</mosaic_0001>

<llo_original>
// kernel: tpu_custom_call.1
$region0: #{tpu_custom_call.1}
  #allocation0 [shape = 'u32[]', space=smem, size = 0x4, offset = 0x4, fixed_abs, tag = 'smem constant byte address 0x4 - core index']
  #allocation1 [shape = 'u32[72,128]{1,0:T(1,128)}', space=vmem, size = 0x9000, scoped, tag = 'internal scratch']
  %s0 = inlined_call_operand.vmem [shape: f32[16,8], index: 0, kind: input, shape index: {}]
  %s1 = inlined_call_operand.vmem [shape: f32[32,16], index: 1, kind: input, shape index: {}]
  %s2 = inlined_call_operand.vmem [shape: f32[32,32], index: 2, kind: input, shape index: {}]
  %s3 = inlined_call_operand.vmem [shape: f32[4,32], index: 3, kind: input, shape index: {}]
  %s4 = inlined_call_operand.vmem [shape: f32[32,3], index: 4, kind: input, shape index: {}]
  %s5 = inlined_call_operand.hbm [shape: f32[4,8], index: 5, kind: output, shape index: {}]
  %s6 = sld [smem:[#allocation0]]
  $region30: #{tpu_custom_call.1} parent=0
    _
  %s8 = ssub.s32 1, %s6
  %s9 = scalar_select 0, %s8, %s6
  $region1: #{tpu_custom_call.1} parent=0
    #allocation2 [shape = 'u8[2048]{0}', space=vmem, size = 0x800, scoped, tag = 'output window, operand 0, single buffered']
    #allocation3 [shape = 's32[1]{0}', space=sflag, size = 0x4, scoped, tag = 'scoped memory for tpu_custom_call.1']
    %10 = vsyncpa [#allocation3], 0
    // Predicated region
    $region2: #{tpu_custom_call.1} parent=1 // pred_check
      _
    $region3: #{tpu_custom_call.1} parent=1 // pred_check_branch
      %12 = sbr.rel (0) target = $region5
    $region4: #{tpu_custom_call.1} parent=1 // pred_region
      _
    $region5: #{tpu_custom_call.1} parent=1 // pred_fallthru
      _
    // Predicated region
    $region6: #{tpu_custom_call.1} parent=1 // pred_check
      _
    $region7: #{tpu_custom_call.1} parent=1 // pred_check_branch
      %14 = sbr.rel (0) target = $region9
    $region8: #{tpu_custom_call.1} parent=1 // pred_region
      _
    $region9: #{tpu_custom_call.1} parent=1 // pred_fallthru
      _
    // Predicated region
    $region10: #{tpu_custom_call.1} parent=1 // pred_check
      _
    $region11: #{tpu_custom_call.1} parent=1 // pred_check_branch
      %16 = sbr.rel (0) target = $region13
    $region12: #{tpu_custom_call.1} parent=1 // pred_region
      _
    $region13: #{tpu_custom_call.1} parent=1 // pred_fallthru
      _
    // Predicated region
    $region14: #{tpu_custom_call.1} parent=1 // pred_check
      _
    $region15: #{tpu_custom_call.1} parent=1 // pred_check_branch
      %18 = sbr.rel (0) target = $region17
    $region16: #{tpu_custom_call.1} parent=1 // pred_region
      _
    $region17: #{tpu_custom_call.1} parent=1 // pred_fallthru
      _
    // Predicated region
    $region18: #{tpu_custom_call.1} parent=1 // pred_check
      _
    $region19: #{tpu_custom_call.1} parent=1 // pred_check_branch
      %20 = sbr.rel (0) target = $region21
    $region20: #{tpu_custom_call.1} parent=1 // pred_region
      _
    $region21: #{tpu_custom_call.1} parent=1 // pred_fallthru
      _
    %v21 = vld [vmem:[%s4] sm:$0xff]
    %v22 = vld [vmem:[%s4 + $0x8] sm:$0xff]
    %v23 = vld [vmem:[%s4 + $0x10] sm:$0xff]
    %v24 = vld [vmem:[%s4 + $0x18] sm:$0xff]
    %v25 = vld [vmem:[%s0] sm:$0xff]
    %v26 = vld [vmem:[%s0 + $0x8] sm:$0xff]
    %v27 = vld [vmem:[%s1] sm:$0xff]
    %v28 = vld [vmem:[%s1 + $0x8] sm:$0xff]
    %v29 = vld [vmem:[%s1 + $0x10] sm:$0xff]
    %v30 = vld [vmem:[%s1 + $0x18] sm:$0xff]
    %32 = vset.pattern.permute.xlu0 0
    %33 = vperm.xlu0 %32, %v21
    %v34 = vpop.permute.xlu0 %33
    %37 = vset.pattern.permute.xlu0 0
    %38 = vperm.xlu0 %37, %v22
    %v39 = vpop.permute.xlu0 %38
    %42 = vset.pattern.permute.xlu0 0
    %43 = vperm.xlu0 %42, %v23
    %v44 = vpop.permute.xlu0 %43
    %47 = vset.pattern.permute.xlu0 0
    %48 = vperm.xlu0 %47, %v24
    %v49 = vpop.permute.xlu0 %48
    %vm51 = vcmask 130048
    %v53 = vsel %vm51, %v27, 0
    %v56 = vsel %vm51, %v28, 0
    %v59 = vsel %vm51, %v29, 0
    %v62 = vsel %vm51, %v30, 0
    %64 = vmatpush.msra.mxu0 0.0
    %65 = vmatpush.msra.mxu0 0.0
    %66 = vmatpush.msra.mxu0 0.0
    %67 = vmatpush.msra.mxu0 0.0
    %68 = vmatpush.msra.mxu0 0.0
    %69 = vmatpush.msra.mxu0 0.0
    %70 = vmatpush.msra.mxu0 0.0
    %71 = vmatpush.msra.mxu0 0.0
    %72 = vmatpush.msra.mxu0 0.0
    %73 = vmatpush.msra.mxu0 0.0
    %74 = vmatpush.msra.mxu0 0.0
    %75 = vmatpush.msra.mxu0 0.0
    %76 = vmatpush.msra.mxu0 0.0
    %77 = vmatpush.msra.mxu0 0.0
    %78 = vmatpush.msra.mxu0 %v26
    %79 = vmatpush.msra.mxu0 %v25
    %80 = vmatmul.f32.gmra.mxu0 %v53
    %v81 = vpop.f32.mrf.mxu0
    %v82 = vadd.f32 %v34, %v81
    %83 = vmatmul.f32.gmra.mxu0 %v56
    %v84 = vpop.f32.mrf.mxu0
    %v85 = vadd.f32 %v39, %v84
    %86 = vmatmul.f32.gmra.mxu0 %v59
    %v87 = vpop.f32.mrf.mxu0
    %v88 = vadd.f32 %v44, %v87
    %89 = vmatmul.f32.gmra.mxu0 %v62
    %v90 = vpop.f32.mrf.mxu0
    %v91 = vadd.f32 %v49, %v90
    %92 = vdwg.mxu0
    %v93 = vmax.f32 %v82, 0.0
    %v94 = vmax.f32 %v85, 0.0
    %v95 = vmax.f32 %v88, 0.0
    %v96 = vmax.f32 %v91, 0.0
    %v97 = vld [vmem:[%s2] sm:$0xff]
    %v98 = vld [vmem:[%s2 + $0x8] sm:$0xff]
    %v99 = vld [vmem:[%s2 + $0x10] sm:$0xff]
    %v100 = vld [vmem:[%s2 + $0x18] sm:$0xff]
    %101 = vset.pattern.permute.xlu0 1
    %102 = vperm.xlu0 %101, %v21
    %v103 = vpop.permute.xlu0 %102
    %105 = vset.pattern.permute.xlu0 1
    %106 = vperm.xlu0 %105, %v22
    %v107 = vpop.permute.xlu0 %106
    %109 = vset.pattern.permute.xlu0 1
    %110 = vperm.xlu0 %109, %v23
    %v111 = vpop.permute.xlu0 %110
    %113 = vset.pattern.permute.xlu0 1
    %114 = vperm.xlu0 %113, %v24
    %v115 = vpop.permute.xlu0 %114
    %vm117 = vcmask 261120
    %v119 = vsel %vm117, %v97, 0
    %v122 = vsel %vm117, %v98, 0
    %v125 = vsel %vm117, %v99, 0
    %v128 = vsel %vm117, %v100, 0
    %130 = vmatpush.msra.mxu0 0.0
    %131 = vmatpush.msra.mxu0 0.0
    %132 = vmatpush.msra.mxu0 0.0
    %133 = vmatpush.msra.mxu0 0.0
    %134 = vmatpush.msra.mxu0 0.0
    %135 = vmatpush.msra.mxu0 0.0
    %136 = vmatpush.msra.mxu0 0.0
    %137 = vmatpush.msra.mxu0 0.0
    %138 = vmatpush.msra.mxu0 0.0
    %139 = vmatpush.msra.mxu0 0.0
    %140 = vmatpush.msra.mxu0 0.0
    %141 = vmatpush.msra.mxu0 0.0
    %142 = vmatpush.msra.mxu0 %v96
    %143 = vmatpush.msra.mxu0 %v95
    %144 = vmatpush.msra.mxu0 %v94
    %145 = vmatpush.msra.mxu0 %v93
    %146 = vmatmul.f32.gmra.mxu0 %v119
    %v147 = vpop.f32.mrf.mxu0
    %v148 = vadd.f32 %v103, %v147
    %149 = vmatmul.f32.gmra.mxu0 %v122
    %v150 = vpop.f32.mrf.mxu0
    %v151 = vadd.f32 %v107, %v150
    %152 = vmatmul.f32.gmra.mxu0 %v125
    %v153 = vpop.f32.mrf.mxu0
    %v154 = vadd.f32 %v111, %v153
    %155 = vmatmul.f32.gmra.mxu0 %v128
    %v156 = vpop.f32.mrf.mxu0
    %v157 = vadd.f32 %v115, %v156
    %158 = vdwg.mxu0
    %v159 = vmax.f32 %v148, 0.0
    %v160 = vmax.f32 %v151, 0.0
    %v161 = vmax.f32 %v154, 0.0
    %v162 = vmax.f32 %v157, 0.0
    %v163 = vld [vmem:[%s3] sm:$0xf]
    %164 = vset.pattern.permute.xlu0 2
    %165 = vperm.xlu0 %164, %v21
    %v166 = vpop.permute.xlu0 %165
    %v169 = vsel %vm117, %v163, 0
    %171 = vmatpush.msra.mxu0 0.0
    %172 = vmatpush.msra.mxu0 0.0
    %173 = vmatpush.msra.mxu0 0.0
    %174 = vmatpush.msra.mxu0 0.0
    %175 = vmatpush.msra.mxu0 0.0
    %176 = vmatpush.msra.mxu0 0.0
    %177 = vmatpush.msra.mxu0 0.0
    %178 = vmatpush.msra.mxu0 0.0
    %179 = vmatpush.msra.mxu0 0.0
    %180 = vmatpush.msra.mxu0 0.0
    %181 = vmatpush.msra.mxu0 0.0
    %182 = vmatpush.msra.mxu0 0.0
    %183 = vmatpush.msra.mxu0 %v162
    %184 = vmatpush.msra.mxu0 %v161
    %185 = vmatpush.msra.mxu0 %v160
    %186 = vmatpush.msra.mxu0 %v159
    %187 = vmatmul.f32.gmra.mxu0 %v169
    %v188 = vpop.f32.mrf.mxu0
    %v189 = vadd.f32 %v166, %v188
    %190 = vdwg.mxu0
    %vm191 = vcmask 60416
    %192 = vst.msk [vmem:[#allocation2] sm:$0xf] %vm191, %v189
    // Predicated region
    $region22: #{tpu_custom_call.1} parent=1 // pred_check
      _
    $region23: #{tpu_custom_call.1} parent=1 // pred_check_branch
      %194 = sbr.rel (0) target = $region25
    $region24: #{tpu_custom_call.1} parent=1 // pred_region
      %196 = vsyncadd [#allocation3], 0
      %s198 = sshll.u32 [#allocation2], 4
      %s199 = int_to_ptr.vmem [resolvable:$true] %s198
      %s200 = sshll.u32 %s5, 4
      %s201 = int_to_ptr.hbm [resolvable:$true] %s200
      %203 = dma.vmem_to_hbm [thread:$0]  %s199, 64, %s201, [#allocation3]
    $region25: #{tpu_custom_call.1} parent=1 // pred_fallthru
      _
    // Predicated region
    $region26: #{tpu_custom_call.1} parent=1 // pred_check
      _
    $region27: #{tpu_custom_call.1} parent=1 // pred_check_branch
      %205 = sbr.rel (0) target = $region29
    $region28: #{tpu_custom_call.1} parent=1 // pred_region
      %207 = dma.done [#allocation3], 64
    $region29: #{tpu_custom_call.1} parent=1 // pred_fallthru
      _
    %208 = vsyncpa [#allocation3], 1

</llo_original>
